<compile_context>
chip_gen: v6e
topology: v6e:2x2x1
jax: 0.10.0
libtpu: 0.0.40
codegen_flags: <defaults>
</compile_context>

<pallas_src>
import math

import jax
import jax.numpy as jnp
from jax.experimental import pallas as pl
from jax.experimental.pallas import tpu as pltpu


# ---------------------------------------------------------------------------
# sincos positional embeddings (deterministic, matches the torch reference math)
# ---------------------------------------------------------------------------
def get_1d_sincos_pos_embed_from_grid(embed_dim, pos):
    assert embed_dim % 2 == 0
    omega = jnp.arange(embed_dim // 2, dtype=jnp.float32)
    omega = omega / (embed_dim / 2.0)
    omega = 1.0 / (10000.0 ** omega)
    pos = pos.reshape(-1).astype(jnp.float32)
    out = jnp.einsum("m,d->md", pos, omega)
    return jnp.concatenate([jnp.sin(out), jnp.cos(out)], axis=1)


def get_multi_sincos_pos_embed(embed_dim, grid_size, add_cls_token=False):
    grid_dim = len(grid_size)
    assert grid_dim >= 2
    assert embed_dim % (grid_dim * 2) == 0
    axes = [jnp.arange(s, dtype=jnp.float32) for s in grid_size]
    grid = jnp.stack(jnp.meshgrid(*axes, indexing="ij"), axis=0)
    emb = [
        get_1d_sincos_pos_embed_from_grid(embed_dim // grid_dim, grid[i])
        for i in range(grid.shape[0])
    ]
    pos_embed = jnp.concatenate(emb, axis=1)
    if add_cls_token:
        pos_embed = jnp.concatenate(
            [jnp.zeros((1, embed_dim), jnp.float32), pos_embed], axis=0
        )
    return pos_embed[None]  # (1, num_patches(+1), embed_dim)


# ---------------------------------------------------------------------------
# Tile selection helpers
# ---------------------------------------------------------------------------
def _round_up(x, m):
    return (x + m - 1) // m * m


def _largest_divisor_leq(n, cap):
    cap = max(1, min(n, cap))
    for d in range(cap, 0, -1):
        if n % d == 0:
            return d
    return 1


def _choose_tiles(batch, np_rows, k, h, vmem_budget=24 * 1024 * 1024, tm_cap=512):
    """Pick (TB, TM, NP_pad): batch elements and patch rows per grid step.

    Budgeted against ~24 MiB of double-buffered tiles so the kernel also fits
    v7x's 64 MiB VMEM (v5e/v6e have more headroom).  TM is a multiple of 16
    (bf16 sublane packing); TB always divides the batch (no batch padding);
    when B >= 2 the grid keeps >= 2 parallel steps so both v7x TensorCores
    have work.
    """

    def row_tile(tb_):
        # per patch row, double-buffered: x tile (bf16) + out tile (f32) per
        # batch element, plus the pos row (f32); weight is grid-invariant but
        # the default pipeline still allocates two buffers for it.
        per_row = 2 * tb_ * k * 2 + 2 * tb_ * h * 4 + 2 * h * 4
        resident = 2 * k * h * 2
        tm_ = max(16, (vmem_budget - resident) // per_row)
        tm_ = min(tm_, tm_cap, _round_up(np_rows, 16))
        return max(16, (tm_ // 16) * 16)  # multiple of 16 (bf16 packing)

    tb = _largest_divisor_leq(batch, 8)
    tm = row_tile(tb)
    # if the VMEM budget squeezed the row tile too hard, trade batch for rows
    while tb > 1 and tm < min(_round_up(np_rows, 16), 64):
        tb = _largest_divisor_leq(batch, tb - 1)
        tm = row_tile(tb)
    np_pad = _round_up(np_rows, tm)
    # v7x has 2 TensorCores: keep >= 2 steps on the parallel grid when B >= 2.
    if (np_pad // tm) * (batch // tb) < 2 and batch >= 2:
        tb = _largest_divisor_leq(batch, batch // 2)
        tm = row_tile(tb)
        np_pad = _round_up(np_rows, tm)
    return tb, tm, np_pad


# ---------------------------------------------------------------------------
# Pallas kernel: fused patch-projection matmul + (pos + bias) add
# ---------------------------------------------------------------------------
def _patch_embed_kernel(x_ref, w_ref, pos_ref, o_ref):
    # x_ref:   (TB, TM, K) bf16  patch rows for TB batch elements
    # w_ref:   (K, H)      bf16  flattened conv weight (transposed), grid-invariant
    # pos_ref: (TM, H)     f32   positional embedding + conv bias (per row tile)
    # o_ref:   (TB, TM, H) f32
    tb, tm, k = x_ref.shape
    h = w_ref.shape[1]
    # single MXU matmul over all TB batch elements (leading-dim collapse only)
    x2d = x_ref[...].reshape(tb * tm, k)
    acc = jnp.dot(x2d, w_ref[...], preferred_element_type=jnp.float32)
    o_ref[...] = acc.reshape(tb, tm, h) + pos_ref[...][None, :, :]


def patch_embed_pallas(patches, w_flat_t, pos_plus_bias):
    """patches: (B, NP, K); w_flat_t: (K, H); pos_plus_bias: (NP, H).

    Returns (B, NP_pad, H) float32 whose rows [0, NP) hold
    patches @ W + (pos + bias).  Padding rows (if any) are NOT stripped here:
    the caller either gathers real rows (masked path) or slices (unmasked
    path), avoiding an extra HBM pass over the largest tensor.
    """
    B, NP, K = patches.shape
    H = w_flat_t.shape[1]

    TB, TM, NP_pad = _choose_tiles(B, NP, K, H)

    # bf16 matmul operands (halve HBM reads, bf16 MXU path) with f32
    # accumulate; pos stays f32 -- it is fetched once per row tile (batch is
    # the inner grid axis) so its HBM cost is negligible and keeping it f32
    # tightens numerics.
    x = patches.astype(jnp.bfloat16)
    w = w_flat_t.astype(jnp.bfloat16)
    pos = pos_plus_bias.astype(jnp.float32)
    if NP_pad != NP:
        x = jnp.pad(x, ((0, 0), (0, NP_pad - NP), (0, 0)))
        pos = jnp.pad(pos, ((0, NP_pad - NP), (0, 0)))

    grid = (NP_pad // TM, B // TB)  # row tile outer, batch inner

    out = pl.pallas_call(
        _patch_embed_kernel,
        out_shape=jax.ShapeDtypeStruct((B, NP_pad, H), jnp.float32),
        grid_spec=pltpu.PrefetchScalarGridSpec(
            num_scalar_prefetch=0,
            grid=grid,
            in_specs=[
                # TB batch elements x TM patch rows per step
                pl.BlockSpec((TB, TM, K), lambda m, b: (b, m, 0)),
                # grid-invariant weight: constant index map -> fetched once.
                # TODO(synk): on v7x, single-buffer this spec
                # (pipeline_mode=pl.Buffered(1)) to reclaim K*H*2 bytes of VMEM.
                pl.BlockSpec((K, H), lambda m, b: (0, 0)),
                # depends only on the OUTER row-tile index -> with batch as the
                # inner axis it is fetched once per row tile, not B//TB times.
                pl.BlockSpec((TM, H), lambda m, b: (m, 0)),
            ],
            out_specs=pl.BlockSpec((TB, TM, H), lambda m, b: (b, m, 0)),
        ),
        compiler_params=pltpu.CompilerParams(
            dimension_semantics=("parallel", "parallel"),
            vmem_limit_bytes=32 * 1024 * 1024,
        ),
    )(x, w, pos)
    return out  # (B, NP_pad, H)


# ---------------------------------------------------------------------------
# Full ViTMAEEmbeddings forward
# ---------------------------------------------------------------------------
class Config:
    image_size = 16
    patch_size = 4
    num_channels = 4
    hidden_size = 32
    use_cls_token = True
    use_learnable_pos_emb = False
    mask_ratio = 0.75
    hidden_dropout_prob = 0.0


def make_params(config, key):
    C, P, Hs = config.num_channels, config.patch_size, config.hidden_size
    kw, kb = jax.random.split(key)
    fan_in = C * P * P
    bound = 1.0 / math.sqrt(fan_in)
    # Conv2d(C, Hs, kernel_size=P, stride=P): weight (Hs, C, P, P), bias (Hs,)
    conv_w = jax.random.uniform(kw, (Hs, C, P, P), jnp.float32, -bound, bound)
    conv_b = jax.random.uniform(kb, (Hs,), jnp.float32, -bound, bound)
    cls_token = jnp.zeros((1, 1, Hs), jnp.float32)  # nn.Parameter(torch.zeros)
    grid_size = (config.image_size // P, config.image_size // P)
    pos_embed = get_multi_sincos_pos_embed(
        Hs, grid_size, add_cls_token=config.use_cls_token
    )
    return dict(conv_w=conv_w, conv_b=conv_b, cls_token=cls_token,
                pos_embed=pos_embed, grid_size=grid_size)


def vit_mae_embeddings_forward(config, params, pixel_values, noise=None,
                               apply_masking=True, rng=None):
    B, C, Himg, Wimg = pixel_values.shape
    P = config.patch_size
    Hs = config.hidden_size
    Gh, Gw = params["grid_size"]
    NP = Gh * Gw
    K = C * P * P

    # --- glue: unfold NCHW image into the patch matrix (B, NP, C*P*P) ---
    # cast first so the XLA transpose-copy writes bf16, not f32.
    # TODO(synk): fold this rearrange (and the pad) into the kernel -- block
    # over (row-tile, batch) pulling (C, rows*P, Wimg) pixel slabs and do the
    # (c,ph,pw)->K rearrange in VMEM -- to remove one HBM pass over the
    # patches; kept in XLA here for lowering robustness of the 6-D transpose.
    x = pixel_values.astype(jnp.bfloat16).reshape(B, C, Gh, P, Gw, P)
    x = jnp.transpose(x, (0, 2, 4, 1, 3, 5))        # (B, Gh, Gw, C, P, P)
    patches = x.reshape(B, NP, K)

    # flattened conv weight: (Hs, C*P*P) -> (K, Hs) for patches @ W^T
    w_flat_t = params["conv_w"].reshape(Hs, K).T

    pos = params["pos_embed"].astype(jnp.float32)   # (1, NP(+1), Hs)
    pos_patch = pos[0, 1:, :] if config.use_cls_token else pos[0]
    # fold the conv bias into the (constant) positional embedding
    pos_plus_bias = pos_patch + params["conv_b"][None, :]

    # --- Pallas hot path: conv-as-matmul + (pos + bias) add ---
    emb_padded = patch_embed_pallas(patches, w_flat_t, pos_plus_bias)  # (B, NP_pad, Hs)

    # --- random masking (argsort/gather: plain JAX glue) ---
    mask, ids_restore = None, None
    if apply_masking:
        seq_len = NP
        # matches the reference module: int(seq_len * (1 - mask_ratio) + 0.5)
        len_keep = int(seq_len * (1 - config.mask_ratio) + 0.5)
        if noise is None:
            if rng is None:
                rng = jax.random.PRNGKey(1)
            noise = jax.random.uniform(rng, (B, seq_len))
        ids_shuffle = jnp.argsort(noise, axis=1)
        ids_restore = jnp.argsort(ids_shuffle, axis=1)
        ids_keep = ids_shuffle[:, :len_keep]
        # gather straight from the padded kernel output: ids_keep < NP, so the
        # padding rows are never referenced and no [:, :NP, :] copy is needed.
        embeddings = jnp.take_along_axis(emb_padded, ids_keep[:, :, None], axis=1)
        mask = jnp.ones((B, seq_len), jnp.float32)
        mask = mask.at[:, :len_keep].set(0.0)
        mask = jnp.take_along_axis(mask, ids_restore, axis=1)
    else:
        embeddings = emb_padded[:, :NP, :]

    # --- cls token prepend (tiny, glue) ---
    if config.use_cls_token:
        cls_tokens = jnp.broadcast_to(params["cls_token"], (B, 1, Hs))
        cls_tokens = cls_tokens + pos[:, :1, :]
        embeddings = jnp.concatenate([cls_tokens, embeddings], axis=1)

    # dropout: identity in eval mode (hidden_dropout_prob applied only in train)
    # TODO(synk): emit bf16 embeddings if the downstream encoder runs in bf16
    # (would halve the kernel's dominant HBM stream); kept f32 to preserve the
    # reference dtype contract.
    return embeddings, mask, ids_restore


# ---------------------------------------------------------------------------
# Test / demo
# ---------------------------------------------------------------------------
def _reference_embeddings(config, params, pixel_values):
    """Pure-JAX f32 reference of the Pallas hot path (no cls, no masking)."""
    B, C, _, _ = pixel_values.shape
    P = config.patch_size
    Hs = config.hidden_size
    Gh, Gw = params["grid_size"]
    NP = Gh * Gw
    xr = pixel_values.reshape(B, C, Gh, P, Gw, P).transpose(0, 2, 4, 1, 3, 5)
    xr = xr.reshape(B, NP, C * P * P)
    return (xr @ params["conv_w"].reshape(Hs, -1).T
            + params["conv_b"] + params["pos_embed"][0, 1:, :])


if __name__ == "__main__":
    config = Config()
    key = jax.random.PRNGKey(0)
    k_param, k_pix, k_noise = jax.random.split(key, 3)

    params = make_params(config, k_param)
    B = 2
    pixel_values = jax.random.normal(
        k_pix,
        (B, config.num_channels, config.image_size, config.image_size),
        jnp.float32,
    )
    num_patches = (config.image_size // config.patch_size) ** 2
    noise = jax.random.uniform(k_noise, (B, num_patches))

    # masked forward (reference semantics)
    embeddings, mask, ids_restore = vit_mae_embeddings_forward(
        config, params, pixel_values, noise=noise, apply_masking=True
    )
    jax.block_until_ready((embeddings, mask, ids_restore))

    len_keep = int(num_patches * (1 - config.mask_ratio) + 0.5)
    assert embeddings.shape == (B, len_keep + 1, config.hidden_size)
    assert mask.shape == (B, num_patches)
    assert ids_restore.shape == (B, num_patches)

    # unmasked output vs pure-JAX f32 reference of the hot path (TB == 1 path)
    emb_nomask, _, _ = vit_mae_embeddings_forward(
        config, params, pixel_values, noise=noise, apply_masking=False
    )
    ref = _reference_embeddings(config, params, pixel_values)
    err = float(jnp.max(jnp.abs(emb_nomask[:, 1:, :] - ref)))
    assert err < 5e-2, f"max abs err {err}"  # bf16-operand tolerance

    # exercise the TB > 1 (batched-tile) kernel path with B = 4
    B4 = 4
    pix4 = jax.random.normal(
        jax.random.PRNGKey(2),
        (B4, config.num_channels, config.image_size, config.image_size),
        jnp.float32,
    )
    emb4, _, _ = vit_mae_embeddings_forward(
        config, params, pix4, apply_masking=False
    )
    jax.block_until_ready(emb4)
    ref4 = _reference_embeddings(config, params, pix4)
    err4 = float(jnp.max(jnp.abs(emb4[:, 1:, :] - ref4)))
    assert err4 < 5e-2, f"max abs err {err4}"

    print("KERNEL_OK")
</pallas_src>

<mosaic_0001>
module attributes {stable_mosaic.version = 11 : i64} {
  func.func @_patch_embed_kernel(%arg0: i32, %arg1: i32, %arg2: memref<1x16x64xbf16, #tpu.memory_space<vmem>>, %arg3: memref<64x32xbf16, #tpu.memory_space<vmem>>, %arg4: memref<16x32xf32, #tpu.memory_space<vmem>>, %arg5: memref<1x16x32xf32, #tpu.memory_space<vmem>>) attributes {dimension_semantics = [#tpu.dimension_semantics<parallel>, #tpu.dimension_semantics<parallel>], iteration_bounds = array<i64: 1, 2>, scalar_prefetch = 0 : i64, scratch_operands = 0 : i64, tpu.core_type = #tpu.core_type<tc>, window_params = [{transform_indices = @transform_0, window_bounds = array<i64: 1, 16, 64>}, {pipeline_mode = #tpu.pipeline_mode<synchronous>, transform_indices = @transform_1, window_bounds = array<i64: 64, 32>}, {transform_indices = @transform_2, window_bounds = array<i64: 16, 32>}, {transform_indices = @transform_3, window_bounds = array<i64: 1, 16, 32>}]} {
    %c0 = arith.constant 0 : index
    %c0_0 = arith.constant 0 : index
    %c0_1 = arith.constant 0 : index
    %0 = vector.load %arg2[%c0, %c0_0, %c0_1] : memref<1x16x64xbf16, #tpu.memory_space<vmem>>, vector<1x16x64xbf16>
    %1 = vector.shape_cast %0 : vector<1x16x64xbf16> to vector<16x64xbf16>
    %c0_2 = arith.constant 0 : index
    %c0_3 = arith.constant 0 : index
    %2 = vector.load %arg3[%c0_2, %c0_3] : memref<64x32xbf16, #tpu.memory_space<vmem>>, vector<64x32xbf16>
    %cst = arith.constant dense<0.000000e+00> : vector<16x32xf32>
    %3 = tpu.matmul %1, %2, %cst {dimension_numbers = #tpu.dot_dimension_numbers<[1], [0], [0], [1], [0, 0, 1, 1], [], []>} : vector<16x64xbf16>, vector<64x32xbf16>, vector<16x32xf32> -> vector<16x32xf32>
    %4 = vector.shape_cast %3 : vector<16x32xf32> to vector<1x16x32xf32>
    %c0_4 = arith.constant 0 : index
    %c0_5 = arith.constant 0 : index
    %5 = vector.load %arg4[%c0_4, %c0_5] : memref<16x32xf32, #tpu.memory_space<vmem>>, vector<16x32xf32>
    %6 = vector.shape_cast %5 : vector<16x32xf32> to vector<1x16x32xf32>
    %7 = arith.addf %4, %6 : vector<1x16x32xf32>
    %c0_6 = arith.constant 0 : index
    %c0_7 = arith.constant 0 : index
    %c0_8 = arith.constant 0 : index
    %8 = vector.load %arg5[%c0_6, %c0_7, %c0_8] : memref<1x16x32xf32, #tpu.memory_space<vmem>>, vector<1x16x32xf32>
    tpu.vector_store %arg5[%c0_6, %c0_7, %c0_8], %7 {strides = array<i32>} : memref<1x16x32xf32, #tpu.memory_space<vmem>>, vector<1x16x32xf32>,
    return
  }
  func.func @transform_0(%arg0: i32, %arg1: i32) -> (i32, i32, i32) {
    %c0_i32 = arith.constant 0 : i32
    %c0_i32_0 = arith.constant 0 : i32
    return %arg1, %arg0, %c0_i32 : i32, i32, i32
  }
  func.func @transform_1(%arg0: i32, %arg1: i32) -> (i32, i32) {
    %c0_i32 = arith.constant 0 : i32
    %c0_i32_0 = arith.constant 0 : i32
    %c0_i32_1 = arith.constant 0 : i32
    return %c0_i32, %c0_i32_0 : i32, i32
  }
  func.func @transform_2(%arg0: i32, %arg1: i32) -> (i32, i32) {
    %c0_i32 = arith.constant 0 : i32
    %c0_i32_0 = arith.constant 0 : i32
    return %arg0, %c0_i32 : i32, i32
  }
  func.func @transform_3(%arg0: i32, %arg1: i32) -> (i32, i32, i32) {
    %c0_i32 = arith.constant 0 : i32
    %c0_i32_0 = arith.constant 0 : i32
    return %arg1, %arg0, %c0_i32 : i32, i32, i32
  }
}

</mosaic_0001>

<llo_original>
// kernel: tpu_custom_call.1
$region0: #{tpu_custom_call.1}
  #allocation0 [shape = 'u32[]', space=smem, size = 0x4, offset = 0x4, fixed_abs, tag = 'smem constant byte address 0x4 - core index']
  #allocation1 [shape = 'u32[144,128]{1,0:T(1,128)}', space=vmem, size = 0x12000, scoped, tag = 'internal scratch']
  %s0 = inlined_call_operand.vmem [shape: bf16[2,16,64], index: 0, kind: input, shape index: {}]
  %s1 = inlined_call_operand.vmem [shape: bf16[64,32], index: 1, kind: input, shape index: {}]
  %s2 = inlined_call_operand.vmem [shape: f32[16,32], index: 2, kind: input, shape index: {}]
  %s3 = inlined_call_operand.hbm [shape: f32[2,16,32], index: 3, kind: output, shape index: {}]
  %s4 = sld [smem:[#allocation0]]
  $region45: #{tpu_custom_call.1} parent=0
    _
  %s6 = ssub.s32 1, %s4
  %s7 = scalar_select 0, %s6, %s4
  $region1: #{tpu_custom_call.1} parent=0
    #allocation2 [shape = 'u8[16384]{0}', space=vmem, size = 0x4000, scoped, tag = 'output window, operand 0']
    #allocation3 [shape = 's32[2]{0}', space=sflag, size = 0x8, scoped, tag = 'scoped memory for tpu_custom_call.1']
    %8 = vsyncpa [#allocation3], 0
    %s9 = scalar_lea.sflag [#allocation3], 1
    %10 = vsyncpa %s9, 0
    loop: start=0, step=1, limit=4
    $region2: #{tpu_custom_call.1} parent=1 // loop_pre_header
      _
    $region3: #{tpu_custom_call.1} parent=1 // loop_header
      %s12 = sphi 0, %s16
      %p13 = scmp.ge.s32.totalorder %s12, 4
      %s19 = sphi 0, %s31
      %s20 = sphi 0, %s27
      %s21 = sphi 0, %s19
      %s22 = sphi 0, %s20
      %s23 = sphi 0, %s21
      %s24 = sphi 0, %s22
      %s36 = sphi 0, %s38
      %s39 = sphi 0, %s36
      %s40 = sphi 0, %s39
      %s56 = sphi 0, %s40
      %s60 = sphi 0, %s60
      %s62 = sphi 0, %s60
      %s63 = sphi 0, %s62
      %s77 = sphi 0, %s63
      %s83 = sphi 0, %s85
      %s86 = sphi 0, %s83
      %s87 = sphi 0, %s86
      %s103 = sphi 0, %s87
      %s111 = sphi 0, %s113
      %s114 = sphi 0, %s111
      %s115 = sphi 0, %s114
      %s131 = sphi 0, %s115
    $region4: #{tpu_custom_call.1} parent=1 // loop_header_branch
      %15 = sbr.rel (%p13) target = $region8
    $region5: #{tpu_custom_call.1} parent=1 // loop_body
      %s17 = ssub.s32 %s12, 1
      %s18 = ssub.s32 %s12, 2
      %s25 = sadd.s32 1, %s20
      %p26 = scmp.ge.s32.totalorder %s25, 2
      %s27 = scalar_select %p26, 0, %s25
      %s28 = sadd.s32 1, %s19
      %s29 = scalar_select %p26, %s28, %s19
      %p30 = scmp.ge.s32.totalorder %s29, 1
      %s31 = scalar_select %p30, 0, %s29
      %s32 = ssub.s32 %s20, %s27
      %s33 = ssub.s32 %s19, %s31
      %s34 = sor.u32 %s32, %s33
      %p35 = scmp.eq.s32.totalorder %s34, 0
      %s37 = sadd.s32 %s36, 1
      %s38 = scalar_select %p35, %s36, %s37
      %p41 = pneg %p35
      %p42 = scmp.eq.s32.totalorder %s12, 1
      %p43 = por %p41, %p42
      %p44 = scmp.ne.s32.totalorder %s36, %s39
      %p45 = scmp.eq.s32.totalorder %s12, 0
      %p46 = por %p44, %p45
      %p47 = scmp.ne.s32.totalorder %s36, %s39
      %p48 = scmp.eq.s32.totalorder %s17, 1
      %p49 = por %p47, %p48
      %p50 = scmp.ne.s32.totalorder %s39, %s40
      %p51 = scmp.eq.s32.totalorder %s17, 0
      %p52 = por %p50, %p51
      %p53 = scmp.ne.s32.totalorder %s39, %s40
      %p54 = scmp.eq.s32.totalorder %s18, 1
      %p55 = por %p53, %p54
      %p57 = scmp.ne.s32.totalorder %s40, %s56
      %p58 = scmp.eq.s32.totalorder %s18, 0
      %p59 = por %p57, %p58
      %s61 = sadd.s32 %s60, 1
      %p64 = scmp.eq.s32.totalorder %s12, 1
      %p65 = scmp.ne.s32.totalorder %s60, %s62
      %p66 = scmp.eq.s32.totalorder %s12, 0
      %p67 = por %p65, %p66
      %p68 = scmp.ne.s32.totalorder %s60, %s62
      %p69 = scmp.eq.s32.totalorder %s17, 1
      %p70 = por %p68, %p69
      %p71 = scmp.ne.s32.totalorder %s62, %s63
      %p72 = scmp.eq.s32.totalorder %s17, 0
      %p73 = por %p71, %p72
      %p74 = scmp.ne.s32.totalorder %s62, %s63
      %p75 = scmp.eq.s32.totalorder %s18, 1
      %p76 = por %p74, %p75
      %p78 = scmp.ne.s32.totalorder %s63, %s77
      %p79 = scmp.eq.s32.totalorder %s18, 0
      %p80 = por %p78, %p79
      %s81 = ssub.s32 %s19, %s31
      %p82 = scmp.eq.s32.totalorder %s81, 0
      %s84 = sadd.s32 %s83, 1
      %s85 = scalar_select %p82, %s83, %s84
      %p88 = pneg %p82
      %p89 = scmp.eq.s32.totalorder %s12, 1
      %p90 = por %p88, %p89
      %p91 = scmp.ne.s32.totalorder %s83, %s86
      %p92 = scmp.eq.s32.totalorder %s12, 0
      %p93 = por %p91, %p92
      %p94 = scmp.ne.s32.totalorder %s83, %s86
      %p95 = scmp.eq.s32.totalorder %s17, 1
      %p96 = por %p94, %p95
      %p97 = scmp.ne.s32.totalorder %s86, %s87
      %p98 = scmp.eq.s32.totalorder %s17, 0
      %p99 = por %p97, %p98
      %p100 = scmp.ne.s32.totalorder %s86, %s87
      %p101 = scmp.eq.s32.totalorder %s18, 1
      %p102 = por %p100, %p101
      %p104 = scmp.ne.s32.totalorder %s87, %s103
      %p105 = scmp.eq.s32.totalorder %s18, 0
      %p106 = por %p104, %p105
      %s107 = ssub.s32 %s20, %s27
      %s108 = ssub.s32 %s19, %s31
      %s109 = sor.u32 %s107, %s108
      %p110 = scmp.eq.s32.totalorder %s109, 0
      %s112 = sadd.s32 %s111, 1
      %s113 = scalar_select %p110, %s111, %s112
      %p116 = pneg %p110
      %p117 = scmp.eq.s32.totalorder %s12, 1
      %p118 = por %p116, %p117
      %p119 = scmp.ne.s32.totalorder %s111, %s114
      %p120 = scmp.eq.s32.totalorder %s12, 0
      %p121 = por %p119, %p120
      %p122 = scmp.ne.s32.totalorder %s111, %s114
      %p123 = scmp.eq.s32.totalorder %s17, 1
      %p124 = por %p122, %p123
      %p125 = scmp.ne.s32.totalorder %s114, %s115
      %p126 = scmp.eq.s32.totalorder %s17, 0
      %p127 = por %p125, %p126
      %p128 = scmp.ne.s32.totalorder %s114, %s115
      %p129 = scmp.eq.s32.totalorder %s18, 1
      %p130 = por %p128, %p129
      %p132 = scmp.ne.s32.totalorder %s115, %s131
      %p133 = scmp.eq.s32.totalorder %s18, 0
      %p134 = por %p132, %p133
      %p135 = scmp.le.s32.totalorder 1, %s12
      %p136 = scmp.lt.s32.totalorder %s12, 3
      %p137 = pnand %p135, %p136
      %p138 = pneg %p137
      // Predicated region
      $region9: #{tpu_custom_call.1} parent=5 // pred_check
        _
      $region10: #{tpu_custom_call.1} parent=5 // pred_check_branch
        %140 = sbr.rel (%p137) target = $region12
      $region11: #{tpu_custom_call.1} parent=5 // pred_region
        %s141 = ssub.s32 %s12, 1
        // Predicated region
        $region13: #{tpu_custom_call.1} parent=11 // pred_check
          %p142 = pneg %p73
        $region14: #{tpu_custom_call.1} parent=11 // pred_check_branch
          %144 = sbr.rel (%p142) target = $region16
        $region15: #{tpu_custom_call.1} parent=11 // pred_region
          _
        $region16: #{tpu_custom_call.1} parent=11 // pred_fallthru
          _
        // Predicated region
        $region17: #{tpu_custom_call.1} parent=11 // pred_check
          %p145 = pneg %p99
        $region18: #{tpu_custom_call.1} parent=11 // pred_check_branch
          %147 = sbr.rel (%p145) target = $region20
        $region19: #{tpu_custom_call.1} parent=11 // pred_region
          %s148 = smul.u32 2, %s21
          %p149 = scmp.lt.s32.totalorder %s148, 1
          %s150 = scalar_select %p149, %s148, 1
          %s151 = smul.addr %s150, 8
          %s152 = scalar_lea.vmem %s2, %s151
          %s153 = smul.u32 2, %s21
        $region20: #{tpu_custom_call.1} parent=11 // pred_fallthru
          _
      $region12: #{tpu_custom_call.1} parent=5 // pred_fallthru
        _
      %p154 = scmp.lt.s32.totalorder %s12, 2
      // Predicated region
      $region21: #{tpu_custom_call.1} parent=5 // pred_check
        %p155 = pneg %p154
      $region22: #{tpu_custom_call.1} parent=5 // pred_check_branch
        %157 = sbr.rel (%p155) target = $region24
      $region23: #{tpu_custom_call.1} parent=5 // pred_region
        // Predicated region
        $region25: #{tpu_custom_call.1} parent=23 // pred_check
          %p158 = pneg %p46
        $region26: #{tpu_custom_call.1} parent=23 // pred_check_branch
          %160 = sbr.rel (%p158) target = $region28
        $region27: #{tpu_custom_call.1} parent=23 // pred_region
          %s161 = smul.u32 2, %s19
          %p162 = scmp.lt.s32.totalorder %s20, 1
          %s163 = scalar_select %p162, %s20, 1
          %p164 = scmp.lt.s32.totalorder %s161, 1
          %s165 = scalar_select %p164, %s161, 1
          %s166 = smul.addr %s163, 2
          %s167 = sadd.s32 %s165, %s166
          %s168 = smul.addr %s167, 4
          %s169 = scalar_lea.vmem %s0, %s168
          %s170 = smul.u32 2, %s19
        $region28: #{tpu_custom_call.1} parent=23 // pred_fallthru
          _
      $region24: #{tpu_custom_call.1} parent=5 // pred_fallthru
        _
      %p171 = scmp.le.s32.totalorder 1, %s12
      %p172 = scmp.lt.s32.totalorder %s12, 3
      %p173 = pnand %p171, %p172
      %p174 = pneg %p173
      // Predicated region
      $region29: #{tpu_custom_call.1} parent=5 // pred_check
        _
      $region30: #{tpu_custom_call.1} parent=5 // pred_check_branch
        %176 = sbr.rel (%p173) target = $region32
      $region31: #{tpu_custom_call.1} parent=5 // pred_region
        %s177 = ssub.s32 %s12, 1
        %s178 = smul.u32 2, %s21
        %p179 = scmp.lt.s32.totalorder %s22, 1
        %s180 = scalar_select %p179, %s22, 1
        %p181 = scmp.lt.s32.totalorder %s178, 1
        %s182 = scalar_select %p181, %s178, 1
        %s183 = smul.addr %s180, 2
        %s184 = sadd.s32 %s182, %s183
        %s185 = smul.addr %s184, 4
        %s186 = scalar_lea.vmem %s0, %s185
        %p187 = pneg %p52
        %p188 = pneg %p49
        %p189 = pneg %p73
        %p190 = pneg %p70
        %s191 = smul.u32 2, %s21
        %p192 = scmp.lt.s32.totalorder %s191, 1
        %s193 = scalar_select %p192, %s191, 1
        %s194 = smul.addr %s193, 8
        %s195 = scalar_lea.vmem %s2, %s194
        %p196 = pneg %p99
        %p197 = pneg %p96
        %p198 = pneg %p127
        %p199 = pneg %p124
        %s200 = sand.u32 %s114, 1
        %s201 = scalar_lea.sflag [#allocation3], %s200
        %s202 = sand.u32 %s114, 1
        %s203 = smul.addr %s202, 16
        %s204 = scalar_lea.vmem [#allocation2], %s203
        %s205 = smul.u32 2, %s21
        %p206 = scmp.lt.s32.totalorder %s22, 1
        %s207 = scalar_select %p206, %s22, 1
        %p208 = scmp.lt.s32.totalorder %s205, 1
        %s209 = scalar_select %p208, %s205, 1
        %s210 = smul.addr %s207, 2
        %s211 = sadd.s32 %s209, %s210
        %s212 = smul.addr %s211, 4
        %s213 = scalar_lea.vmem %s0, %s212
        %s214 = smul.u32 2, %s21
        %s215 = smul.u32 2, %s21
        %p216 = scmp.lt.s32.totalorder %s215, 1
        %s217 = scalar_select %p216, %s215, 1
        %s218 = smul.addr %s217, 8
        %s219 = scalar_lea.vmem %s2, %s218
        %s220 = smul.u32 2, %s21
        %s221 = smul.u32 2, %s21
        %v223 = vld [vmem:[%s213] sm:$0xf]
        %v224 = vld [vmem:[%s213 + $0x4] sm:$0xf]
        %v225 = vld [vmem:[%s1] sm:$0xf]
        %v226 = vld [vmem:[%s1 + $0x4] sm:$0xf]
        %v227 = vld [vmem:[%s1 + $0x8] sm:$0xf]
        %v228 = vld [vmem:[%s1 + $0xc] sm:$0xf]
        %v229 = vld [vmem:[%s1 + $0x10] sm:$0xf]
        %v230 = vld [vmem:[%s1 + $0x14] sm:$0xf]
        %v231 = vld [vmem:[%s1 + $0x18] sm:$0xf]
        %v232 = vld [vmem:[%s1 + $0x1c] sm:$0xf]
        %v235 = vunpack.c.l.b16 %v223
        %v236 = vunpack.c.l.b16 %v224
        %v237 = vpack.c.b16 %v236, %v235
        %v246 = vunpack.c.l.b16 %v225
        %v247 = vunpack.c.l.b16 %v226
        %v248 = vunpack.c.l.b16 %v227
        %v249 = vunpack.c.l.b16 %v228
        %v250 = vunpack.c.l.b16 %v229
        %v251 = vunpack.c.l.b16 %v230
        %v252 = vunpack.c.l.b16 %v231
        %v253 = vunpack.c.l.b16 %v232
        %v254 = vpack.c.b16 %v247, %v246
        %v255 = vpack.c.b16 %v249, %v248
        %v256 = vpack.c.b16 %v251, %v250
        %v257 = vpack.c.b16 %v253, %v252
        %vm262 = vcmask 523264
        %v264 = vsel %vm262, %v237, 0
        %266 = vmatprep.subr.bf16.mxu0 0
        %267 = vmatpush1.bf16.msra.mxu0 0
        %268 = vmatprep.subr.bf16.mxu0 0
        %269 = vmatpush1.bf16.msra.mxu0 0
        %270 = vmatprep.subr.bf16.mxu0 0
        %271 = vmatpush1.bf16.msra.mxu0 0
        %272 = vmatprep.subr.bf16.mxu0 0
        %273 = vmatpush1.bf16.msra.mxu0 0
        %274 = vmatprep.subr.bf16.mxu0 0
        %275 = vmatpush1.bf16.msra.mxu0 %v257
        %276 = vmatprep.subr.bf16.mxu0 0
        %277 = vmatpush1.bf16.msra.mxu0 %v256
        %278 = vmatprep.subr.bf16.mxu0 0
        %279 = vmatpush1.bf16.msra.mxu0 %v255
        %280 = vmatprep.subr.bf16.mxu0 0
        %281 = vmatpush1.bf16.msra.mxu0 %v254
        %282 = vmatprep.subr.bf16.mxu0 0
        %283 = vmatpush2.bf16.msra.mxu0 0
        %284 = vmatprep.subr.bf16.mxu0 0
        %285 = vmatpush2.bf16.msra.mxu0 0
        %286 = vmatprep.subr.bf16.mxu0 0
        %287 = vmatpush2.bf16.msra.mxu0 0
        %288 = vmatprep.subr.bf16.mxu0 0
        %289 = vmatpush2.bf16.msra.mxu0 0
        %290 = vmatprep.subr.bf16.mxu0 0
        %291 = vmatpush2.bf16.msra.mxu0 0
        %292 = vmatprep.subr.bf16.mxu0 0
        %293 = vmatpush2.bf16.msra.mxu0 0
        %294 = vmatprep.subr.bf16.mxu0 0
        %295 = vmatpush2.bf16.msra.mxu0 0
        %296 = vmatprep.subr.bf16.mxu0 0
        %297 = vmatpush2.bf16.msra.mxu0 0
        %298 = vmatprep.mubr.bf16.mxu0 0
        %299 = vmatmul.mubr.bf16.gmra.mxu0 %v264
        %v300 = vpop.f32.mrf.mxu0
        %v301 = vadd.f32 0.0, %v300
        %v302 = vpop.f32.mrf.mxu0
        %v303 = vpop.f32.mrf.mxu0
        %v304 = vadd.f32 0.0, %v303
        %v305 = vpop.f32.mrf.mxu0
        %306 = vdwg.mxu0
        %v307 = vld [vmem:[%s219] sm:$0xff]
        %v308 = vld [vmem:[%s219 + $0x8] sm:$0xff]
        %v309 = vadd.f32 %v301, %v307
        %v310 = vadd.f32 %v304, %v308
        %vm311 = vcmask 261120
        %312 = vst.msk [vmem:[%s204] sm:$0xff] %vm311, %v309
        %313 = vst.msk [vmem:[%s204 + $0x8] sm:$0xff] %vm311, %v310
        %s314 = sand.u32 %s114, 1
        %s315 = scalar_lea.sflag [#allocation3], %s314
        %s316 = sand.u32 %s114, 1
        %s317 = smul.addr %s316, 16
        %s318 = scalar_lea.vmem [#allocation2], %s317
        // Predicated region
        $region33: #{tpu_custom_call.1} parent=31 // pred_check
          %p319 = pneg %p124
        $region34: #{tpu_custom_call.1} parent=31 // pred_check_branch
          %321 = sbr.rel (%p319) target = $region36
        $region35: #{tpu_custom_call.1} parent=31 // pred_region
          %s322 = smul.u32 2, %s21
          %s324 = ssub.s32 256, 256
          %325 = vsyncadd %s315, %s324
          %s326 = smul.addr %s22, 2
          %s327 = sadd.s32 %s322, %s326
          %s328 = smul.addr %s327, 128
          %s329 = scalar_lea.hbm %s3, %s328
          %s330 = sshll.u32 %s318, 4
          %s331 = int_to_ptr.vmem [resolvable:$true] %s330
          %336 = dma.vmem_to_hbm [thread:$0]  %s331, 256, %s329, %s315, 128, 128, 8
        $region36: #{tpu_custom_call.1} parent=31 // pred_fallthru
          _
      $region32: #{tpu_custom_call.1} parent=5 // pred_fallthru
        _
      %p337 = scmp.le.s32.totalorder 2, %s12
      // Predicated region
      $region37: #{tpu_custom_call.1} parent=5 // pred_check
        %p338 = pneg %p337
      $region38: #{tpu_custom_call.1} parent=5 // pred_check_branch
        %340 = sbr.rel (%p338) target = $region40
      $region39: #{tpu_custom_call.1} parent=5 // pred_region
        %s341 = ssub.s32 %s12, 2
        // Predicated region
        $region41: #{tpu_custom_call.1} parent=39 // pred_check
          %p342 = pneg %p130
        $region42: #{tpu_custom_call.1} parent=39 // pred_check_branch
          %344 = sbr.rel (%p342) target = $region44
        $region43: #{tpu_custom_call.1} parent=39 // pred_region
          %s345 = sand.u32 %s115, 1
          %s346 = scalar_lea.sflag [#allocation3], %s345
          %s347 = sand.u32 %s115, 1
          %s348 = smul.addr %s347, 16
          %s349 = scalar_lea.vmem [#allocation2], %s348
          %350 = dma.done %s346, 256
        $region44: #{tpu_custom_call.1} parent=39 // pred_fallthru
          _
      $region40: #{tpu_custom_call.1} parent=5 // pred_fallthru
        _
    $region6: #{tpu_custom_call.1} parent=1 // loop_footer
      %s16 = sadd.s32 1, %s12
    $region7: #{tpu_custom_call.1} parent=1 // loop_footer_branch
      %11 = sbr.rel target = $region3
    $region8: #{tpu_custom_call.1} parent=1 // loop_exit
      _
    %351 = vsyncpa [#allocation3], 1
    %s352 = scalar_lea.sflag [#allocation3], 1
    %353 = vsyncpa %s352, 1

</llo_original>
